<compile_context>
chip_gen: v7x
topology: tpu7x:2x2x1
jax: 0.10.0
libtpu: 0.0.40
codegen_flags: <defaults>
</compile_context>

<pallas_src>
import jax
import jax.numpy as jnp
from jax.experimental import pallas as pl
from jax.experimental.pallas import tpu as pltpu


EPSILON = 1e-10


def _l2norm_kernel(w_ref, x_ref, o_ref):
    # w_ref: (1, C, 1)          per-channel scale (constant across the grid)
    # x_ref: (NT, C, HW_TILE)   a tile of the input
    x = x_ref[...].astype(jnp.float32)
    w = w_ref[...].astype(jnp.float32)                 # hoisted once per block
    sumsq = jnp.sum(x * x, axis=1, keepdims=True)      # (NT, 1, HW_TILE)
    inv = pl.reciprocal(jnp.sqrt(sumsq) + EPSILON, approx=False)
    o_ref[...] = ((x * inv) * w).astype(o_ref.dtype)


def _largest_divisor_leq(n, cap):
    cap = max(1, min(n, int(cap)))
    for d in range(cap, 0, -1):
        if n % d == 0:
            return d
    return 1


def l2norm(x, weight, *, target_block_bytes=2 << 20, max_unaligned_row_bytes=6 << 20):
    """x: (N, C, H, W), weight: (C,) -> (N, C, H, W).  Matches torch L2Norm."""
    N, C, H, W = x.shape
    HW = H * W
    itemsize = jnp.dtype(x.dtype).itemsize

    x_flat = x.reshape(N, C, HW)
    w3d = weight.reshape(1, C, 1)

    row_unit_bytes = C * 128 * itemsize          # bytes of one (C, 128) column stripe
    hw_pad = HW
    sliced = False

    if HW % 128 == 0:
        # Lane-aligned: tile HW by a multiple of 128 that divides HW.
        max_units = max(1, target_block_bytes // row_unit_bytes)
        hw_tile = _largest_divisor_leq(HW // 128, max_units) * 128
    elif C * HW * itemsize <= max_unaligned_row_bytes:
        # Unaligned but small: take the full HW per block; avoids HBM pad/slice copies.
        hw_tile = HW
    else:
        # Unaligned and large: pad HW to a lane-aligned tile, slice back afterwards.
        cap_tile = max(128, (target_block_bytes // row_unit_bytes) * 128)
        hw_tile = min(((HW + 127) // 128) * 128, cap_tile)
        hw_pad = ((HW + hw_tile - 1) // hw_tile) * hw_tile
        x_flat = jnp.pad(x_flat, ((0, 0), (0, 0), (0, hw_pad - HW)))
        sliced = True

    row_bytes = C * hw_tile * itemsize
    n_tile = _largest_divisor_leq(N, max(1, target_block_bytes // row_bytes))

    grid = (N // n_tile, hw_pad // hw_tile)
    block_bytes = n_tile * row_bytes
    # in + out, double-buffered, plus weight + headroom; capped for the smallest VMEM gen.
    vmem_limit = int(min(32 * 1024 * 1024,
                         max(16 * 1024 * 1024, 5 * block_bytes + (1 << 20))))

    out = pl.pallas_call(
        _l2norm_kernel,
        out_shape=jax.ShapeDtypeStruct((N, C, hw_pad), x.dtype),
        grid=grid,
        in_specs=[
            pl.BlockSpec((1, C, 1), lambda i, j: (0, 0, 0)),             # weight
            pl.BlockSpec((n_tile, C, hw_tile), lambda i, j: (i, 0, j)),  # x tile
        ],
        out_specs=pl.BlockSpec((n_tile, C, hw_tile), lambda i, j: (i, 0, j)),
        compiler_params=pltpu.CompilerParams(
            dimension_semantics=("parallel", "parallel"),
            vmem_limit_bytes=vmem_limit,
        ),
    )(w3d, x_flat)

    if sliced:
        out = out[:, :, :HW]
    return out.reshape(N, C, H, W)


def _l2norm_ref(x, weight):
    norm = jnp.sqrt(jnp.sum(x.astype(jnp.float32) ** 2, axis=1, keepdims=True)) + EPSILON
    return (weight[None, :, None, None] * (x / norm)).astype(x.dtype)


if __name__ == "__main__":
    key = jax.random.PRNGKey(0)

    # Small shapes consistent with the module's forward (NCHW).
    N, C, H, W = 2, 4, 16, 16
    x = jax.random.normal(key, (N, C, H, W), dtype=jnp.float32)

    # Deterministic parameter init, matching torch.nn.init.constant_(weight, scale).
    scale = 20.0
    weight = jnp.full((C,), scale, dtype=jnp.float32)

    out = jax.block_until_ready(l2norm(x, weight))
    ref = _l2norm_ref(x, weight)
    assert out.shape == (N, C, H, W)
    assert jnp.allclose(out, ref, atol=1e-5, rtol=1e-5)

    # Non-128-aligned spatial size: full-HW (no-pad) path.
    x2 = jax.random.normal(jax.random.PRNGKey(1), (3, C, 19, 19), dtype=jnp.float32)
    out2 = jax.block_until_ready(l2norm(x2, weight))
    assert jnp.allclose(out2, _l2norm_ref(x2, weight), atol=1e-5, rtol=1e-5)

    # Non-128-aligned spatial size forced through the pad + slice-back path.
    C3 = 64
    w3 = jnp.full((C3,), scale, dtype=jnp.float32)
    x3 = jax.random.normal(jax.random.PRNGKey(2), (2, C3, 19, 19), dtype=jnp.float32)
    out3 = jax.block_until_ready(l2norm(x3, w3, max_unaligned_row_bytes=64 * 1024))
    assert jnp.allclose(out3, _l2norm_ref(x3, w3), atol=1e-5, rtol=1e-5)

    print("KERNEL_OK")
</pallas_src>

<mosaic_0001>
module attributes {stable_mosaic.version = 11 : i64} {
  func.func @_l2norm_kernel(%arg0: i32, %arg1: i32, %arg2: memref<1x4x1xf32, #tpu.memory_space<vmem>>, %arg3: memref<2x4x256xf32, #tpu.memory_space<vmem>>, %arg4: memref<2x4x256xf32, #tpu.memory_space<vmem>>) attributes {dimension_semantics = [#tpu.dimension_semantics<parallel>, #tpu.dimension_semantics<parallel>], iteration_bounds = array<i64: 1, 1>, scalar_prefetch = 0 : i64, scratch_operands = 0 : i64, tpu.core_type = #tpu.core_type<tc>, window_params = [{pipeline_mode = #tpu.pipeline_mode<synchronous>, transform_indices = @transform_0, window_bounds = array<i64: 1, 4, 1>}, {transform_indices = @transform_1, window_bounds = array<i64: 2, 4, 256>}, {transform_indices = @transform_2, window_bounds = array<i64: 2, 4, 256>}]} {
    %c0 = arith.constant 0 : index
    %c0_0 = arith.constant 0 : index
    %c0_1 = arith.constant 0 : index
    %0 = vector.load %arg3[%c0, %c0_0, %c0_1] : memref<2x4x256xf32, #tpu.memory_space<vmem>>, vector<2x4x256xf32>
    %c0_2 = arith.constant 0 : index
    %c0_3 = arith.constant 0 : index
    %c0_4 = arith.constant 0 : index
    %1 = vector.load %arg2[%c0_2, %c0_3, %c0_4] : memref<1x4x1xf32, #tpu.memory_space<vmem>>, vector<1x4x1xf32>
    %2 = arith.mulf %0, %0 : vector<2x4x256xf32>
    %cst = arith.constant dense<0.000000e+00> : vector<2x256xf32>
    %3 = vector.multi_reduction <add>, %2, %cst [1] : vector<2x4x256xf32> to vector<2x256xf32>
    %4 = vector.shape_cast %3 : vector<2x256xf32> to vector<2x1x256xf32>
    %5 = math.sqrt %4 : vector<2x1x256xf32>
    %cst_5 = arith.constant 1.000000e-10 : f32
    %6 = vector.broadcast %cst_5 : f32 to vector<2x1x256xf32>
    %7 = arith.addf %5, %6 : vector<2x1x256xf32>
    %8 = tpu.reciprocal %7 : vector<2x1x256xf32> -> vector<2x1x256xf32>
    %9 = vector.broadcast %8 : vector<2x1x256xf32> to vector<2x4x256xf32>
    %10 = arith.mulf %0, %9 : vector<2x4x256xf32>
    %11 = vector.broadcast %1 : vector<1x4x1xf32> to vector<2x4x256xf32>
    %12 = arith.mulf %10, %11 : vector<2x4x256xf32>
    %c0_6 = arith.constant 0 : index
    %c0_7 = arith.constant 0 : index
    %c0_8 = arith.constant 0 : index
    %13 = vector.load %arg4[%c0_6, %c0_7, %c0_8] : memref<2x4x256xf32, #tpu.memory_space<vmem>>, vector<2x4x256xf32>
    tpu.vector_store %arg4[%c0_6, %c0_7, %c0_8], %12 {strides = array<i32>} : memref<2x4x256xf32, #tpu.memory_space<vmem>>, vector<2x4x256xf32>,
    return
  }
  func.func @transform_0(%arg0: i32, %arg1: i32) -> (i32, i32, i32) {
    %c0_i32 = arith.constant 0 : i32
    %c0_i32_0 = arith.constant 0 : i32
    %c0_i32_1 = arith.constant 0 : i32
    %c0_i32_2 = arith.constant 0 : i32
    return %c0_i32, %c0_i32_0, %c0_i32_1 : i32, i32, i32
  }
  func.func @transform_1(%arg0: i32, %arg1: i32) -> (i32, i32, i32) {
    %c0_i32 = arith.constant 0 : i32
    %c0_i32_0 = arith.constant 0 : i32
    return %arg0, %c0_i32, %arg1 : i32, i32, i32
  }
  func.func @transform_2(%arg0: i32, %arg1: i32) -> (i32, i32, i32) {
    %c0_i32 = arith.constant 0 : i32
    %c0_i32_0 = arith.constant 0 : i32
    return %arg0, %c0_i32, %arg1 : i32, i32, i32
  }
}

</mosaic_0001>

<llo_original>
// kernel: tpu_custom_call.1
$region0: #{tpu_custom_call.1}
  #allocation0 [shape = 'u32[]', space=smem, size = 0x4, offset = 0x4, fixed_abs, tag = 'smem constant byte address 0x4 - core index']
  #allocation1 [shape = 'u32[144,128]{1,0:T(1,128)}', space=vmem, size = 0x12000, scoped, tag = 'internal scratch']
  %s0 = inlined_call_operand.vmem [shape: f32[1,4,1], index: 0, kind: input, shape index: {}]
  %s1 = inlined_call_operand.hbm [shape: f32[2,4,256], index: 1, kind: input, shape index: {}]
  %s2 = inlined_call_operand.hbm [shape: f32[2,4,256], index: 2, kind: output, shape index: {}]
  %s3 = sld [smem:[#allocation0]]
  $region22: #{tpu_custom_call.1} parent=0
    _
  %s5 = ssub.s32 1, %s3
  %s6 = scalar_select 0, %s5, %s3
  $region1: #{tpu_custom_call.1} parent=0
    #allocation2 [shape = 'u8[8192]{0}', space=vmem, size = 0x2000, scoped, tag = 'input window, operand 1, single buffered']
    #allocation3 [shape = 's32[1]{0}', space=sflag, size = 0x4, scoped, tag = 'scoped memory for tpu_custom_call.1']
    #allocation4 [shape = 's32[1]{0}', space=sflag, size = 0x4, scoped, tag = 'scoped memory for tpu_custom_call.1']
    #allocation5 [shape = 'u8[8192]{0}', space=vmem, size = 0x2000, scoped, tag = 'output window, operand 0, single buffered']
    %7 = vsyncpa [#allocation3], 0
    %8 = vsyncpa [#allocation4], 0
    // Predicated region
    $region2: #{tpu_custom_call.1} parent=1 // pred_check
      _
    $region3: #{tpu_custom_call.1} parent=1 // pred_check_branch
      %10 = sbr.rel (0) target = $region5
    $region4: #{tpu_custom_call.1} parent=1 // pred_region
      _
    $region5: #{tpu_custom_call.1} parent=1 // pred_fallthru
      _
    // Predicated region
    $region6: #{tpu_custom_call.1} parent=1 // pred_check
      _
    $region7: #{tpu_custom_call.1} parent=1 // pred_check_branch
      %12 = sbr.rel (0) target = $region9
    $region8: #{tpu_custom_call.1} parent=1 // pred_region
      %s14 = ssub.s32 256, 256
      %15 = vsyncadd [#allocation3], %s14
      %s16 = sshll.u32 [#allocation2], 4
      %s17 = int_to_ptr.vmem [resolvable:$true] %s16
      %22 = dma.hbm_to_vmem [thread:$0]  %s1, 256, %s17, [#allocation3], 128, 128, 8
    $region9: #{tpu_custom_call.1} parent=1 // pred_fallthru
      _
    // Predicated region
    $region10: #{tpu_custom_call.1} parent=1 // pred_check
      _
    $region11: #{tpu_custom_call.1} parent=1 // pred_check_branch
      %24 = sbr.rel (0) target = $region13
    $region12: #{tpu_custom_call.1} parent=1 // pred_region
      %25 = dma.done [#allocation3], 256
    $region13: #{tpu_custom_call.1} parent=1 // pred_fallthru
      _
    %v26 = vld [vmem:[#allocation2] sm:$0xff]
    %v27 = vld [vmem:[#allocation2 + $0x8] sm:$0xff]
    %v28 = vld [vmem:[%s0] sm:$0xf]
    %v29 = vmul.f32 %v26, %v26
    %v30 = vmul.f32 %v27, %v27
    %v33 = vcombine.high %v29, %v29
    %v34 = vcombine.high %v30, %v30
    %vm37 = vcmask 1043456
    %v38 = vsel %vm37, %v29, 0.0
    %v39 = vrot.slane %v38, 4
    %v40 = vadd.f32 %v38, %v39
    %v41 = vrot.slane %v40, 2
    %v42 = vadd.f32 %v40, %v41
    %v43 = vrot.slane %v42, 1
    %v44 = vadd.f32 %v42, %v43
    %v45 = vsel %vm37, %v33, 0.0
    %v46 = vrot.slane %v45, 4
    %v47 = vadd.f32 %v45, %v46
    %v48 = vrot.slane %v47, 2
    %v49 = vadd.f32 %v47, %v48
    %v50 = vrot.slane %v49, 1
    %v51 = vadd.f32 %v49, %v50
    %v52 = vsel %vm37, %v30, 0.0
    %v53 = vrot.slane %v52, 4
    %v54 = vadd.f32 %v52, %v53
    %v55 = vrot.slane %v54, 2
    %v56 = vadd.f32 %v54, %v55
    %v57 = vrot.slane %v56, 1
    %v58 = vadd.f32 %v56, %v57
    %v59 = vsel %vm37, %v34, 0.0
    %v60 = vrot.slane %v59, 4
    %v61 = vadd.f32 %v59, %v60
    %v62 = vrot.slane %v61, 2
    %v63 = vadd.f32 %v61, %v62
    %v64 = vrot.slane %v63, 1
    %v65 = vadd.f32 %v63, %v64
    %v66 = vrsqrt.pop %v44
    %v67 = vmul.f32 %v44, %v66
    %vm68 = vcmp.eq.f32.partialorder %v44, inf
    %v69 = vsel %vm68, %v44, %v67
    %vm70 = vcmp.eq.f32.partialorder %v44, 0.0
    %v71 = vand.u32 %v44, 2147483648
    %v72 = vsel %vm70, %v71, %v69
    %v73 = vrsqrt.pop %v51
    %v74 = vmul.f32 %v51, %v73
    %vm75 = vcmp.eq.f32.partialorder %v51, inf
    %v76 = vsel %vm75, %v51, %v74
    %vm77 = vcmp.eq.f32.partialorder %v51, 0.0
    %v78 = vand.u32 %v51, 2147483648
    %v79 = vsel %vm77, %v78, %v76
    %v80 = vrsqrt.pop %v58
    %v81 = vmul.f32 %v58, %v80
    %vm82 = vcmp.eq.f32.partialorder %v58, inf
    %v83 = vsel %vm82, %v58, %v81
    %vm84 = vcmp.eq.f32.partialorder %v58, 0.0
    %v85 = vand.u32 %v58, 2147483648
    %v86 = vsel %vm84, %v85, %v83
    %v87 = vrsqrt.pop %v65
    %v88 = vmul.f32 %v65, %v87
    %vm89 = vcmp.eq.f32.partialorder %v65, inf
    %v90 = vsel %vm89, %v65, %v88
    %vm91 = vcmp.eq.f32.partialorder %v65, 0.0
    %v92 = vand.u32 %v65, 2147483648
    %v93 = vsel %vm91, %v92, %v90
    %v94 = vadd.f32 %v72, 1e-10
    %v95 = vadd.f32 %v79, 1e-10
    %v96 = vadd.f32 %v86, 1e-10
    %v97 = vadd.f32 %v93, 1e-10
    %v98 = vrcp.pop %v94
    %v99 = vrcp.pop %v95
    %v100 = vrcp.pop %v96
    %v101 = vrcp.pop %v97
    %v106 = vcombine.low %v98, %v99
    %v107 = vcombine.low %v100, %v101
    %v110 = vmul.f32 %v26, %v106
    %v111 = vmul.f32 %v27, %v107
    %113 = vset.pattern.permute.xlu0 0
    %114 = vperm.xlu0 %113, %v28
    %v115 = vpop.permute.xlu0 %114
    %v117 = vunpack.c.l.s4 839922192
    %v118 = vunpack.c.0.s8 %v117
    %v119 = vlaneseq
    %v120 = vshrl.u32 %v119, 7
    %v121 = vsub.s32 %v118, %v120
    %v122 = vrot.slane %v115, %v121
    %v124 = vmul.f32 %v110, %v122
    %v125 = vmul.f32 %v111, %v122
    %126 = vst [vmem:[#allocation5] sm:$0xff] %v124
    %127 = vst [vmem:[#allocation5 + $0x8] sm:$0xff] %v125
    // Predicated region
    $region14: #{tpu_custom_call.1} parent=1 // pred_check
      _
    $region15: #{tpu_custom_call.1} parent=1 // pred_check_branch
      %129 = sbr.rel (0) target = $region17
    $region16: #{tpu_custom_call.1} parent=1 // pred_region
      %s131 = ssub.s32 256, 256
      %132 = vsyncadd [#allocation4], %s131
      %s133 = sshll.u32 [#allocation5], 4
      %s134 = int_to_ptr.vmem [resolvable:$true] %s133
      %139 = dma.vmem_to_hbm [thread:$0]  %s134, 256, %s2, [#allocation4], 128, 128, 8
    $region17: #{tpu_custom_call.1} parent=1 // pred_fallthru
      _
    // Predicated region
    $region18: #{tpu_custom_call.1} parent=1 // pred_check
      _
    $region19: #{tpu_custom_call.1} parent=1 // pred_check_branch
      %141 = sbr.rel (0) target = $region21
    $region20: #{tpu_custom_call.1} parent=1 // pred_region
      %142 = dma.done [#allocation4], 256
    $region21: #{tpu_custom_call.1} parent=1 // pred_fallthru
      _
    %143 = vsyncpa [#allocation3], 1
    %144 = vsyncpa [#allocation4], 1

</llo_original>
